<compile_context>
chip_gen: v7x
topology: tpu7x:2x2x1
jax: 0.10.0
libtpu: 0.0.40
codegen_flags: <defaults>
</compile_context>

<pallas_src>
import functools

import jax
import jax.numpy as jnp
from jax.experimental import pallas as pl
from jax.experimental.pallas import tpu as pltpu


_MIN_TR = 32              # row-tile granularity (safe for u8 packing and u32)
_BLOCK_BYTES = 6 << 20    # per-block VMEM budget; x2 dbl-buffer x (in+out) < limit
_SPLIT_BYTES = 1 << 20    # force >= 2 grid steps above this (v7x megacore)
_VMEM_LIMIT = 48 << 20


def _and_kernel(x_ref, o_ref, *, mask):
    x = x_ref[...]
    if x.dtype == jnp.uint8:
        # Fallback path only: widen to i32 for robust Mosaic lowering of the
        # packed 8-bit dtype; lossless for 0..255 values.
        o_ref[...] = (x.astype(jnp.int32) & mask).astype(o_ref.dtype)
    else:
        # Fast path: native 32-bit AND, one VPU op per 4 pixels.
        o_ref[...] = x & jnp.asarray(mask, dtype=x.dtype)


def _choose_tr(rows, row_bytes, total_bytes):
    if rows <= _MIN_TR:
        # Full-extent second-minor block (always legal).
        # TODO(synk): a shape with <=32 rows but a multi-MiB trailing dim would
        # need a lane split; never happens for image posterize inputs.
        return rows
    if total_bytes <= _SPLIT_BYTES:
        # Small input: one full-extent block is cheapest.
        return rows
    # Large input: tile rows; cap block at ~_BLOCK_BYTES and guarantee >= 2
    # grid steps so the "parallel" axis can shard across both v7x TCs.
    budget_rows = max(_MIN_TR, (_BLOCK_BYTES // row_bytes) // _MIN_TR * _MIN_TR)
    half = -(-rows // 2)                      # cdiv(rows, 2)
    half = -(-half // _MIN_TR) * _MIN_TR      # round up to multiple of _MIN_TR
    return max(_MIN_TR, min(budget_rows, half))


def _run_and(x2d, mask, donate):
    rows, lane = x2d.shape
    row_bytes = lane * x2d.dtype.itemsize
    tr = _choose_tr(rows, row_bytes, rows * row_bytes)
    grid = (pl.cdiv(rows, tr),)
    extra = {"input_output_aliases": {0: 0}} if donate else {}
    return pl.pallas_call(
        functools.partial(_and_kernel, mask=mask),
        out_shape=jax.ShapeDtypeStruct((rows, lane), x2d.dtype),
        grid=grid,
        in_specs=[pl.BlockSpec((tr, lane), lambda i: (i, 0))],
        out_specs=pl.BlockSpec((tr, lane), lambda i: (i, 0)),
        compiler_params=pltpu.CompilerParams(
            dimension_semantics=("parallel",),
            vmem_limit_bytes=_VMEM_LIMIT,
        ),
        **extra,
    )(x2d)


def posterize(img, M, donate=False):
    """Pallas Posterize.  img: uint8 array (any shape, e.g. NCHW), M: level."""
    if img.dtype != jnp.uint8:
        # torchvision v1 posterize only accepts torch.uint8 tensors.
        raise TypeError("posterize expects a uint8 image")
    # TODO(synk): torchvision v2 float-image posterize path not implemented
    # (the reference v1 functional is uint8-only).

    m_eff = float(M) / 16.0 * 10.0
    bits = int(round((10.0 - m_eff) / 10.0 * 8.0))  # half-to-even, like torch.round
    bits = max(0, min(8, bits))

    # Trace-time early-outs: identity level costs zero HBM traffic, zero level
    # is write-only.
    if bits >= 8:
        return img
    if bits <= 0:
        return jnp.zeros_like(img)

    mask8 = (0xFF << (8 - bits)) & 0xFF
    orig_shape = img.shape
    n = img.size

    # Fast path: view 4 uint8 pixels as one uint32 word (free bitcast/reshape
    # views in the wrapper) so the kernel does one native 32-bit AND per 4
    # pixels and never unpacks/repacks 8-bit vregs.  Lane-dense layout (last
    # dim a multiple of 128 words) keeps every load/store an unmasked vld/vst.
    if n % 4 == 0:
        n32 = n // 4
        lane = next((l for l in (1024, 512, 256, 128) if n32 % l == 0), None)
        if lane is not None:
            x32 = jax.lax.bitcast_convert_type(
                img.reshape(n32, 4), jnp.uint32
            ).reshape(n32 // lane, lane)
            mask32 = mask8 * 0x01010101
            out32 = _run_and(x32, mask32, donate)
            return jax.lax.bitcast_convert_type(out32, jnp.uint8).reshape(orig_shape)

    # Fallback: uint8 end-to-end.  Prefer a lane-dense flattening; otherwise
    # keep the native trailing dim, but always tile the rows (never a single
    # whole-array VMEM block).
    lane = next((l for l in (1024, 512, 256, 128) if n % l == 0), orig_shape[-1])
    x2d = img.reshape(n // lane, lane)
    out2d = _run_and(x2d, mask8, donate)
    return out2d.reshape(orig_shape)


def _reference_posterize(img, M):
    """Pure-JAX reference of the same semantics, for verification."""
    m_eff = float(M) / 16.0 * 10.0
    bits = int(round((10.0 - m_eff) / 10.0 * 8.0))
    bits = max(0, min(8, bits))
    mask = jnp.uint8((0xFF << (8 - bits)) & 0xFF)
    return jnp.bitwise_and(img, mask)


if __name__ == "__main__":
    key = jax.random.PRNGKey(0)
    B, C, H, W = 2, 4, 16, 16
    img = jax.random.randint(key, (B, C, H, W), 0, 256, dtype=jnp.int32).astype(
        jnp.uint8
    )

    # Main case: M = 4.0 -> self.M = 2.5 -> bits = round(6.0) = 6 -> mask = 0xFC.
    M = 4.0
    out = jax.block_until_ready(posterize(img, M))
    ref = _reference_posterize(img, M)
    assert out.shape == img.shape and out.dtype == img.dtype
    assert bool(jnp.all(out == ref)), "mismatch vs reference (M=4.0)"

    # Early-out edge levels (no kernel launch): bits == 8 -> identity,
    # bits == 0 -> zeros.
    out_id = jax.block_until_ready(posterize(img, 0.0))       # bits = 8
    assert bool(jnp.all(out_id == img)), "identity early-out mismatch"
    out_zero = jax.block_until_ready(posterize(img, 16.0))    # bits = 0
    assert bool(jnp.all(out_zero == 0)), "zero early-out mismatch"

    print("KERNEL_OK")
</pallas_src>

<mosaic_0001>
module attributes {stable_mosaic.version = 11 : i64} {
  func.func @_and_kernel(%arg0: i32, %arg1: memref<1x512xi32, #tpu.memory_space<vmem>>, %arg2: memref<1x512xi32, #tpu.memory_space<vmem>>) attributes {dimension_semantics = [#tpu.dimension_semantics<parallel>], iteration_bounds = array<i64: 1>, scalar_prefetch = 0 : i64, scratch_operands = 0 : i64, tpu.core_type = #tpu.core_type<tc>, window_params = [{transform_indices = @transform_0, window_bounds = array<i64: 1, 512>}, {transform_indices = @transform_1, window_bounds = array<i64: 1, 512>}]} {
    %c0 = arith.constant 0 : index
    %c0_0 = arith.constant 0 : index
    %0 = vector.load %arg1[%c0, %c0_0] : memref<1x512xi32, #tpu.memory_space<vmem>>, vector<1x512xi32>
    %c-50529028_i32 = arith.constant -50529028 : i32
    %1 = vector.broadcast %c-50529028_i32 : i32 to vector<1x512xi32>
    %2 = arith.andi %0, %1 : vector<1x512xi32>
    %c0_1 = arith.constant 0 : index
    %c0_2 = arith.constant 0 : index
    %3 = vector.load %arg2[%c0_1, %c0_2] : memref<1x512xi32, #tpu.memory_space<vmem>>, vector<1x512xi32>
    tpu.vector_store %arg2[%c0_1, %c0_2], %2 {strides = array<i32>} : memref<1x512xi32, #tpu.memory_space<vmem>>, vector<1x512xi32>,
    return
  }
  func.func @transform_0(%arg0: i32) -> (i32, i32) {
    %c0_i32 = arith.constant 0 : i32
    %c0_i32_0 = arith.constant 0 : i32
    return %arg0, %c0_i32 : i32, i32
  }
  func.func @transform_1(%arg0: i32) -> (i32, i32) {
    %c0_i32 = arith.constant 0 : i32
    %c0_i32_0 = arith.constant 0 : i32
    return %arg0, %c0_i32 : i32, i32
  }
}

</mosaic_0001>

<llo_original>
// kernel: tpu_custom_call.1
$region0: #{tpu_custom_call.1}
  #allocation0 [shape = 'u32[]', space=smem, size = 0x4, offset = 0x4, fixed_abs, tag = 'smem constant byte address 0x4 - core index']
  #allocation1 [shape = 'u32[144,128]{1,0:T(1,128)}', space=vmem, size = 0x12000, scoped, tag = 'internal scratch']
  %s0 = inlined_call_operand.hbm [shape: u32[1,512], index: 0, kind: input, shape index: {}]
  %s1 = inlined_call_operand.hbm [shape: u32[1,512], index: 1, kind: output, shape index: {}]
  %s2 = sld [smem:[#allocation0]]
  $region18: #{tpu_custom_call.1} parent=0
    _
  %s4 = ssub.s32 1, %s2
  %s5 = scalar_select 0, %s4, %s2
  $region1: #{tpu_custom_call.1} parent=0
    #allocation2 [shape = 'u8[2048]{0}', space=vmem, size = 0x800, scoped, tag = 'input window, operand 0, single buffered']
    #allocation3 [shape = 's32[1]{0}', space=sflag, size = 0x4, scoped, tag = 'scoped memory for tpu_custom_call.1']
    #allocation4 [shape = 's32[1]{0}', space=sflag, size = 0x4, scoped, tag = 'scoped memory for tpu_custom_call.1']
    #allocation5 [shape = 'u8[2048]{0}', space=vmem, size = 0x800, scoped, tag = 'output window, operand 0, single buffered']
    %6 = vsyncpa [#allocation3], 0
    %7 = vsyncpa [#allocation4], 0
    // Predicated region
    $region2: #{tpu_custom_call.1} parent=1 // pred_check
      _
    $region3: #{tpu_custom_call.1} parent=1 // pred_check_branch
      %9 = sbr.rel (0) target = $region5
    $region4: #{tpu_custom_call.1} parent=1 // pred_region
      %s11 = ssub.s32 64, 64
      %12 = vsyncadd [#allocation3], %s11
      %s14 = sshll.u32 [#allocation2], 4
      %s15 = int_to_ptr.vmem [resolvable:$true] %s14
      %17 = dma.hbm_to_vmem [thread:$0]  %s0, 64, %s15, [#allocation3]
    $region5: #{tpu_custom_call.1} parent=1 // pred_fallthru
      _
    // Predicated region
    $region6: #{tpu_custom_call.1} parent=1 // pred_check
      _
    $region7: #{tpu_custom_call.1} parent=1 // pred_check_branch
      %19 = sbr.rel (0) target = $region9
    $region8: #{tpu_custom_call.1} parent=1 // pred_region
      %20 = dma.done [#allocation3], 64
    $region9: #{tpu_custom_call.1} parent=1 // pred_fallthru
      _
    %v21 = vld [vmem:[#allocation2] sm:$0xf]
    %v22 = vand.u32 %v21, 4244438268
    %v23 = vlaneseq
    %vm24 = vcmp.ge.s32.totalorder %v23, 0
    %vm25 = vcmp.lt.s32.totalorder %v23, 512
    %vm26 = vmand %vm24, %vm25
    %27 = vst.msk [vmem:[#allocation5] sm:$0xf] %vm26, %v22
    // Predicated region
    $region10: #{tpu_custom_call.1} parent=1 // pred_check
      _
    $region11: #{tpu_custom_call.1} parent=1 // pred_check_branch
      %29 = sbr.rel (0) target = $region13
    $region12: #{tpu_custom_call.1} parent=1 // pred_region
      %s31 = ssub.s32 64, 64
      %32 = vsyncadd [#allocation4], %s31
      %s34 = sshll.u32 [#allocation5], 4
      %s35 = int_to_ptr.vmem [resolvable:$true] %s34
      %37 = dma.vmem_to_hbm [thread:$0]  %s35, 64, %s1, [#allocation4]
    $region13: #{tpu_custom_call.1} parent=1 // pred_fallthru
      _
    // Predicated region
    $region14: #{tpu_custom_call.1} parent=1 // pred_check
      _
    $region15: #{tpu_custom_call.1} parent=1 // pred_check_branch
      %39 = sbr.rel (0) target = $region17
    $region16: #{tpu_custom_call.1} parent=1 // pred_region
      %40 = dma.done [#allocation4], 64
    $region17: #{tpu_custom_call.1} parent=1 // pred_fallthru
      _
    %41 = vsyncpa [#allocation3], 1
    %42 = vsyncpa [#allocation4], 1

</llo_original>
